<compile_context>
chip_gen: v6e
topology: v6e:2x2x1
jax: 0.10.0
libtpu: 0.0.40
codegen_flags: <defaults>
</compile_context>

<pallas_src>
import functools

import jax
import jax.numpy as jnp
from jax.experimental import pallas as pl
from jax.experimental.pallas import tpu as pltpu


# ---------------------------------------------------------------------------
# Kernel
# ---------------------------------------------------------------------------
def _liquid_cell_kernel(
    h_ref, u_ref,
    wc_ref, uc_ref, bc_ref,      # fused gate|tau block-diag weights
    wo_ref, bo_ref,              # velocity head (block-diag)
    hnew_ref, v_ref,
    *, folded_hidden, dt, min_tau, max_tau,
):
    HF = folded_hidden
    h = h_ref[...]                       # (tm, HF)  f32 recurrent state
    h32 = h.astype(jnp.float32)
    mm_dtype = wc_ref.dtype              # bf16 (default) or f32

    # Fused gate/tau pre-activations.  Lanes [0:HF) -> update gate,
    # [HF:2HF) -> tau, both in the same row-folded layout as h.
    z = (
        jnp.dot(h.astype(mm_dtype), wc_ref[...], preferred_element_type=jnp.float32)
        + jnp.dot(u_ref[...], uc_ref[...], preferred_element_type=jnp.float32)
        + bc_ref[...]
    )                                    # (tm, 2*HF) f32
    # Reference clamps tau_raw to [-50, 50]; clamping the sigmoid half too is
    # a no-op at f32 precision, so clamp the whole fused tile.
    z = jnp.clip(z, -50.0, 50.0)

    # One shared EUP exp pass over the full lane-dense tile.
    e = jnp.exp(-jnp.abs(z))
    z_pre, z_tau = z[:, :HF], z[:, HF:]   # 128-aligned slices (no relayout)
    e_pre, e_tau = e[:, :HF], e[:, HF:]

    # Stable sigmoid from the shared exp:  sig(z) = 1/(1+e) if z>=0 else e/(1+e)
    r = pl.reciprocal(1.0 + e_pre, approx=False)
    f_h = jnp.where(z_pre >= 0, r, e_pre * r)

    # softplus(z) = max(z, 0) + log1p(exp(-|z|))
    softplus = jnp.maximum(z_tau, 0.0) + jnp.log1p(e_tau)
    tau = jnp.maximum(min_tau + softplus * (max_tau - min_tau), 1e-6)

    # Liquid update (all f32); divide moved onto the EUP via reciprocal.
    h_dot = f_h - h32 * pl.reciprocal(tau, approx=False)
    h_new = h32 + dt * h_dot
    # torch.nan_to_num(h_new, nan=0.0): NaN -> 0, +/-inf -> +/-finfo(f32).max.
    fmax = float(jnp.finfo(jnp.float32).max)
    h_new = jnp.where(jnp.isnan(h_new), 0.0, h_new)
    h_new = jnp.clip(h_new, -fmax, fmax)
    hnew_ref[...] = h_new.astype(hnew_ref.dtype)

    # Velocity head (block-diag W_out.T), output stays in the folded layout.
    v_pre = (
        jnp.dot(h_new.astype(wo_ref.dtype), wo_ref[...],
                preferred_element_type=jnp.float32)
        + bo_ref[...]
    )
    v_ref[...] = jnp.tanh(v_pre).astype(v_ref.dtype)


# ---------------------------------------------------------------------------
# Weight packing (hoist out of the per-step path for recurrent use)
# ---------------------------------------------------------------------------
def _block_diag(w, r):
    """kron(I_r, w): (k, n) -> (r*k, r*n) block-diagonal."""
    if r == 1:
        return w
    return jnp.kron(jnp.eye(r, dtype=w.dtype), w)


def pack_params(params, *, fold, compute_dtype=jnp.bfloat16):
    """Pre-transpose, block-diagonalize and fuse the cell weights.

    compute_dtype is the dtype of the streamed matmul weights (bf16 is valid
    and recommended on every TPU generation; all elementwise/tau math stays
    f32 in the kernel).
    """
    R = int(fold)
    H = params["W_h"].shape[0]
    wh = _block_diag(params["W_h"].T, R)            # (R*H, R*H)
    wt = _block_diag(params["W_tau"].T, R)
    wc = jnp.concatenate([wh, wt], axis=1).astype(compute_dtype)   # (R*H, 2*R*H)
    uh = _block_diag(params["U_h"].T, R)            # (R*D, R*H)
    ut = _block_diag(params["U_tau"].T, R)
    uc = jnp.concatenate([uh, ut], axis=1).astype(compute_dtype)   # (R*D, 2*R*H)
    bc = jnp.concatenate(
        [jnp.tile(params["b_h"], R), jnp.tile(params["b_tau"], R)]
    ).reshape(1, 2 * R * H).astype(jnp.float32)
    wo = _block_diag(params["W_out"].T, R).astype(compute_dtype)   # (R*H, R*3)
    bo = jnp.tile(params["b_out"], R).reshape(1, -1).astype(jnp.float32)
    return {"wc": wc, "uc": uc, "bc": bc, "wo": wo, "bo": bo}


# ---------------------------------------------------------------------------
# Tiling
# ---------------------------------------------------------------------------
def _choose_folded_tile(mf, desired_f):
    """Pick (folded-row tile, n_tiles): tile multiple of 8, tail padding <8/tile.

    Single tile for small mf (grid is a serial loop on single-TC v5e/v6e);
    even tile count when splitting so v7x's two TensorCores stay balanced.
    """
    desired_f = max(8, (desired_f // 8) * 8)
    if mf <= desired_f:
        return max(8, -(-mf // 8) * 8), 1
    n = -(-mf // desired_f)                 # ceil
    if n > 1 and n % 2:
        n += 1                              # balanced megacore split (v7x)
    tm = max(8, -(-(-(-mf // n)) // 8) * 8)  # round_up(ceil(mf/n), 8)
    return tm, n


# ---------------------------------------------------------------------------
# Forward wrapper
# ---------------------------------------------------------------------------
def liquid_cell_forward(h, u, params=None, *, packed=None, dt=0.1, min_tau=0.1,
                        max_tau=10.0, tile_rows=4096, fold=None,
                        compute_dtype=jnp.bfloat16):
    """h: (B, N, H), u: (B, N, D) -> (h_new (B, N, H), v (B, N, 3)).

    fold: rows folded onto the lane axis (default 128 // H, e.g. 4 for H=32;
          pass fold=8 on v6e/v7x to feed the 256-wide MXU in a single pass).
    compute_dtype: dtype of the streamed matmul weights and u (bf16 default,
          valid on all generations).  The recurrent state h is always streamed
          in its own dtype and only cast for the dot; tau / update math is f32.
    packed: output of pack_params() — pass it for recurrent use so the weight
          transpose/concat/block-diag is not re-emitted every timestep.
    """
    B, N, H = h.shape
    D = u.shape[-1]
    out_dtype = h.dtype

    if packed is None:
        if fold is None:
            fold = 128 // H if (H <= 128 and 128 % H == 0) else 1
        packed = pack_params(params, fold=fold, compute_dtype=compute_dtype)
    wc, uc, bc, wo, bo = (packed["wc"], packed["uc"], packed["bc"],
                          packed["wo"], packed["bo"])
    R = wc.shape[0] // H                 # fold actually baked into the weights
    HF, DF, VF = R * H, R * D, R * 3

    M = B * N
    Mf = -(-M // R)                      # folded rows (ceil)
    tm_f, n_tiles = _choose_folded_tile(Mf, max(8, tile_rows // R))
    Mf_pad = tm_f * n_tiles
    M_pad = Mf_pad * R

    h2 = h.reshape(M, H)                               # keep carried state f32
    u2 = u.reshape(M, D).astype(uc.dtype)
    if M_pad != M:                                     # zero rows are harmless
        h2 = jnp.pad(h2, ((0, M_pad - M), (0, 0)))
        u2 = jnp.pad(u2, ((0, M_pad - M), (0, 0)))
    hf = h2.reshape(Mf_pad, HF)          # row fold: pure view, no data movement
    uf = u2.reshape(Mf_pad, DF)

    row = lambda cols: pl.BlockSpec((tm_f, cols), lambda i: (i, 0))
    full = lambda a: pl.BlockSpec(a.shape, lambda i: (0,) * a.ndim)

    kernel = functools.partial(
        _liquid_cell_kernel, folded_hidden=HF, dt=dt,
        min_tau=min_tau, max_tau=max_tau,
    )

    h_new_f, v_f = pl.pallas_call(
        kernel,
        out_shape=(
            jax.ShapeDtypeStruct((Mf_pad, HF), out_dtype),
            jax.ShapeDtypeStruct((Mf_pad, VF), out_dtype),
        ),
        grid_spec=pltpu.PrefetchScalarGridSpec(
            num_scalar_prefetch=0,
            grid=(n_tiles,),
            in_specs=[
                row(HF),      # h (folded, lane-dense)
                row(DF),      # u (folded)
                full(wc),     # (R*H, 2*R*H)  blockdiag(W_h.T) | blockdiag(W_tau.T)
                full(uc),     # (R*D, 2*R*H)
                full(bc),     # (1, 2*R*H)
                full(wo),     # (R*H, R*3)
                full(bo),     # (1, R*3)
            ],
            out_specs=[row(HF), row(VF)],
        ),
        compiler_params=pltpu.CompilerParams(
            dimension_semantics=("parallel",),
        ),
    )(hf, uf, wc, uc, bc, wo, bo)

    h_new = h_new_f.reshape(M_pad, H)[:M].reshape(B, N, H)
    v = v_f.reshape(M_pad, 3)[:M].reshape(B, N, 3)
    return h_new, v


# ---------------------------------------------------------------------------
# Init + pure-JAX reference
# ---------------------------------------------------------------------------
def _xavier_uniform(key, shape):
    fan_out, fan_in = shape
    bound = jnp.sqrt(6.0 / (fan_in + fan_out))
    return jax.random.uniform(key, shape, jnp.float32, -bound, bound)


def init_params(key, input_dim=3, hidden_dim=32):
    ks = jax.random.split(key, 5)
    return {
        "W_h": _xavier_uniform(ks[0], (hidden_dim, hidden_dim)),
        "U_h": _xavier_uniform(ks[1], (hidden_dim, input_dim)),
        "b_h": jnp.zeros((hidden_dim,), jnp.float32),
        "W_tau": _xavier_uniform(ks[2], (hidden_dim, hidden_dim)),
        "U_tau": _xavier_uniform(ks[3], (hidden_dim, input_dim)),
        "b_tau": jnp.zeros((hidden_dim,), jnp.float32),
        "W_out": _xavier_uniform(ks[4], (3, hidden_dim)),
        "b_out": jnp.zeros((3,), jnp.float32),
    }


def _reference_forward(h, u, p, dt=0.1, min_tau=0.1, max_tau=10.0):
    tau_raw = h @ p["W_tau"].T + u @ p["U_tau"].T + p["b_tau"]
    tau_raw = jnp.clip(tau_raw, -50.0, 50.0)
    tau = min_tau + jax.nn.softplus(tau_raw) * (max_tau - min_tau)
    tau = jnp.maximum(tau, 1e-6)
    pre = h @ p["W_h"].T + u @ p["U_h"].T + p["b_h"]
    f_h = jax.nn.sigmoid(pre)
    h_new = h + dt * (-h / tau + f_h)
    h_new = jnp.nan_to_num(h_new, nan=0.0)
    v = jnp.tanh(h_new @ p["W_out"].T + p["b_out"])
    return h_new, v


if __name__ == "__main__":
    # TODO(synk): set_params_from_vector / the torch try-except fallback are
    # host-side parameter plumbing with no kernel equivalent; not translated.
    B, N, H, D = 2, 128, 32, 3
    key = jax.random.PRNGKey(0)
    k_h, k_u, k_p = jax.random.split(key, 3)

    params = init_params(k_p, input_dim=D, hidden_dim=H)
    h = jax.random.normal(k_h, (B, N, H), jnp.float32)
    u = jax.random.normal(k_u, (B, N, D), jnp.float32)

    h_ref, v_ref = _reference_forward(h, u, params, dt=0.1)

    # f32 weights: strict check against the reference.
    packed_f32 = pack_params(params, fold=128 // H, compute_dtype=jnp.float32)
    h_new, v = liquid_cell_forward(h, u, packed=packed_f32, dt=0.1)
    jax.block_until_ready((h_new, v))
    assert jnp.allclose(h_new, h_ref, atol=1e-5, rtol=1e-5)
    assert jnp.allclose(v, v_ref, atol=1e-5, rtol=1e-5)

    # Default path: bf16 matmul weights (all generations), f32-streamed state.
    packed_bf16 = pack_params(params, fold=128 // H, compute_dtype=jnp.bfloat16)
    h_new_bf, v_bf = liquid_cell_forward(h, u, packed=packed_bf16, dt=0.1)
    jax.block_until_ready((h_new_bf, v_bf))
    assert jnp.allclose(h_new_bf, h_ref, atol=2e-2, rtol=2e-2)
    assert jnp.allclose(v_bf, v_ref, atol=2e-2, rtol=2e-2)

    print("KERNEL_OK")
</pallas_src>

<mosaic_0001>
module attributes {stable_mosaic.version = 11 : i64} {
  func.func @_liquid_cell_kernel(%arg0: i32, %arg1: memref<64x128xf32, #tpu.memory_space<vmem>>, %arg2: memref<64x12xf32, #tpu.memory_space<vmem>>, %arg3: memref<128x256xf32, #tpu.memory_space<vmem>>, %arg4: memref<12x256xf32, #tpu.memory_space<vmem>>, %arg5: memref<1x256xf32, #tpu.memory_space<vmem>>, %arg6: memref<128x12xf32, #tpu.memory_space<vmem>>, %arg7: memref<1x12xf32, #tpu.memory_space<vmem>>, %arg8: memref<64x128xf32, #tpu.memory_space<vmem>>, %arg9: memref<64x12xf32, #tpu.memory_space<vmem>>) attributes {dimension_semantics = [#tpu.dimension_semantics<parallel>], iteration_bounds = array<i64: 1>, scalar_prefetch = 0 : i64, scratch_operands = 0 : i64, tpu.core_type = #tpu.core_type<tc>, window_params = [{transform_indices = @transform_0, window_bounds = array<i64: 64, 128>}, {transform_indices = @transform_1, window_bounds = array<i64: 64, 12>}, {pipeline_mode = #tpu.pipeline_mode<synchronous>, transform_indices = @transform_2, window_bounds = array<i64: 128, 256>}, {pipeline_mode = #tpu.pipeline_mode<synchronous>, transform_indices = @transform_3, window_bounds = array<i64: 12, 256>}, {pipeline_mode = #tpu.pipeline_mode<synchronous>, transform_indices = @transform_4, window_bounds = array<i64: 1, 256>}, {pipeline_mode = #tpu.pipeline_mode<synchronous>, transform_indices = @transform_5, window_bounds = array<i64: 128, 12>}, {pipeline_mode = #tpu.pipeline_mode<synchronous>, transform_indices = @transform_6, window_bounds = array<i64: 1, 12>}, {transform_indices = @transform_7, window_bounds = array<i64: 64, 128>}, {transform_indices = @transform_8, window_bounds = array<i64: 64, 12>}]} {
    %c0 = arith.constant 0 : index
    %c0_0 = arith.constant 0 : index
    %0 = vector.load %arg1[%c0, %c0_0] : memref<64x128xf32, #tpu.memory_space<vmem>>, vector<64x128xf32>
    %c0_1 = arith.constant 0 : index
    %c0_2 = arith.constant 0 : index
    %1 = vector.load %arg3[%c0_1, %c0_2] : memref<128x256xf32, #tpu.memory_space<vmem>>, vector<128x256xf32>
    %cst = arith.constant dense<0.000000e+00> : vector<64x256xf32>
    %2 = tpu.matmul %0, %1, %cst {dimension_numbers = #tpu.dot_dimension_numbers<[1], [0], [0], [1], [0, 0, 1, 1], [], []>} : vector<64x128xf32>, vector<128x256xf32>, vector<64x256xf32> -> vector<64x256xf32>
    %c0_3 = arith.constant 0 : index
    %c0_4 = arith.constant 0 : index
    %3 = vector.load %arg2[%c0_3, %c0_4] : memref<64x12xf32, #tpu.memory_space<vmem>>, vector<64x12xf32>
    %c0_5 = arith.constant 0 : index
    %c0_6 = arith.constant 0 : index
    %4 = vector.load %arg4[%c0_5, %c0_6] : memref<12x256xf32, #tpu.memory_space<vmem>>, vector<12x256xf32>
    %cst_7 = arith.constant dense<0.000000e+00> : vector<64x256xf32>
    %5 = tpu.matmul %3, %4, %cst_7 {dimension_numbers = #tpu.dot_dimension_numbers<[1], [0], [0], [1], [0, 0, 1, 1], [], []>} : vector<64x12xf32>, vector<12x256xf32>, vector<64x256xf32> -> vector<64x256xf32>
    %6 = arith.addf %2, %5 : vector<64x256xf32>
    %c0_8 = arith.constant 0 : index
    %c0_9 = arith.constant 0 : index
    %7 = vector.load %arg5[%c0_8, %c0_9] : memref<1x256xf32, #tpu.memory_space<vmem>>, vector<1x256xf32>
    %8 = vector.broadcast %7 : vector<1x256xf32> to vector<64x256xf32>
    %9 = arith.addf %6, %8 : vector<64x256xf32>
    %cst_10 = arith.constant -5.000000e+01 : f32
    %cst_11 = arith.constant 5.000000e+01 : f32
    %10 = vector.broadcast %cst_10 : f32 to vector<64x256xf32>
    %11 = arith.maximumf %10, %9 : vector<64x256xf32>
    %12 = vector.broadcast %cst_11 : f32 to vector<64x256xf32>
    %13 = arith.minimumf %12, %11 : vector<64x256xf32>
    %14 = math.absf %13 : vector<64x256xf32>
    %cst_12 = arith.constant 0.000000e+00 : f32
    %15 = vector.broadcast %cst_12 : f32 to vector<64x256xf32>
    %16 = arith.subf %15, %14 : vector<64x256xf32>
    %17 = math.exp %16 : vector<64x256xf32>
    %18 = vector.extract_strided_slice %13 {offsets = [0, 0], sizes = [64, 128], strides = [1, 1]} : vector<64x256xf32> to vector<64x128xf32>
    %19 = vector.extract_strided_slice %13 {offsets = [0, 128], sizes = [64, 128], strides = [1, 1]} : vector<64x256xf32> to vector<64x128xf32>
    %20 = vector.extract_strided_slice %17 {offsets = [0, 0], sizes = [64, 128], strides = [1, 1]} : vector<64x256xf32> to vector<64x128xf32>
    %21 = vector.extract_strided_slice %17 {offsets = [0, 128], sizes = [64, 128], strides = [1, 1]} : vector<64x256xf32> to vector<64x128xf32>
    %cst_13 = arith.constant 1.000000e+00 : f32
    %22 = vector.broadcast %cst_13 : f32 to vector<64x128xf32>
    %23 = arith.addf %22, %20 : vector<64x128xf32>
    %24 = tpu.reciprocal %23 : vector<64x128xf32> -> vector<64x128xf32>
    %cst_14 = arith.constant 0.000000e+00 : f32
    %25 = vector.broadcast %cst_14 : f32 to vector<64x128xf32>
    %26 = arith.cmpf oge, %18, %25 : vector<64x128xf32>
    %27 = arith.mulf %20, %24 : vector<64x128xf32>
    %28 = arith.select %26, %24, %27 : vector<64x128xi1>, vector<64x128xf32>
    %cst_15 = arith.constant 0.000000e+00 : f32
    %29 = vector.broadcast %cst_15 : f32 to vector<64x128xf32>
    %30 = arith.maximumf %19, %29 : vector<64x128xf32>
    %31 = math.log1p %21 : vector<64x128xf32>
    %32 = arith.addf %30, %31 : vector<64x128xf32>
    %cst_16 = arith.constant 9.89999961 : f32
    %33 = vector.broadcast %cst_16 : f32 to vector<64x128xf32>
    %34 = arith.mulf %32, %33 : vector<64x128xf32>
    %cst_17 = arith.constant 1.000000e-01 : f32
    %35 = vector.broadcast %cst_17 : f32 to vector<64x128xf32>
    %36 = arith.addf %35, %34 : vector<64x128xf32>
    %cst_18 = arith.constant 9.99999997E-7 : f32
    %37 = vector.broadcast %cst_18 : f32 to vector<64x128xf32>
    %38 = arith.maximumf %36, %37 : vector<64x128xf32>
    %39 = tpu.reciprocal %38 : vector<64x128xf32> -> vector<64x128xf32>
    %40 = arith.mulf %0, %39 : vector<64x128xf32>
    %41 = arith.subf %28, %40 : vector<64x128xf32>
    %cst_19 = arith.constant 1.000000e-01 : f32
    %42 = vector.broadcast %cst_19 : f32 to vector<64x128xf32>
    %43 = arith.mulf %42, %41 : vector<64x128xf32>
    %44 = arith.addf %0, %43 : vector<64x128xf32>
    %45 = arith.cmpf one, %44, %44 : vector<64x128xf32>
    %cst_20 = arith.constant 0.000000e+00 : f32
    %46 = vector.broadcast %cst_20 : f32 to vector<64x128xf32>
    %47 = arith.select %45, %46, %44 : vector<64x128xi1>, vector<64x128xf32>
    %cst_21 = arith.constant -3.40282347E+38 : f32
    %cst_22 = arith.constant 3.40282347E+38 : f32
    %48 = vector.broadcast %cst_21 : f32 to vector<64x128xf32>
    %49 = arith.maximumf %48, %47 : vector<64x128xf32>
    %50 = vector.broadcast %cst_22 : f32 to vector<64x128xf32>
    %51 = arith.minimumf %50, %49 : vector<64x128xf32>
    %c0_23 = arith.constant 0 : index
    %c0_24 = arith.constant 0 : index
    %52 = vector.load %arg8[%c0_23, %c0_24] : memref<64x128xf32, #tpu.memory_space<vmem>>, vector<64x128xf32>
    tpu.vector_store %arg8[%c0_23, %c0_24], %51 {strides = array<i32>} : memref<64x128xf32, #tpu.memory_space<vmem>>, vector<64x128xf32>,
    %c0_25 = arith.constant 0 : index
    %c0_26 = arith.constant 0 : index
    %53 = vector.load %arg6[%c0_25, %c0_26] : memref<128x12xf32, #tpu.memory_space<vmem>>, vector<128x12xf32>
    %cst_27 = arith.constant dense<0.000000e+00> : vector<64x12xf32>
    %54 = tpu.matmul %51, %53, %cst_27 {dimension_numbers = #tpu.dot_dimension_numbers<[1], [0], [0], [1], [0, 0, 1, 1], [], []>} : vector<64x128xf32>, vector<128x12xf32>, vector<64x12xf32> -> vector<64x12xf32>
    %c0_28 = arith.constant 0 : index
    %c0_29 = arith.constant 0 : index
    %55 = vector.load %arg7[%c0_28, %c0_29] : memref<1x12xf32, #tpu.memory_space<vmem>>, vector<1x12xf32>
    %56 = vector.broadcast %55 : vector<1x12xf32> to vector<64x12xf32>
    %57 = arith.addf %54, %56 : vector<64x12xf32>
    %58 = math.tanh %57 : vector<64x12xf32>
    %c0_30 = arith.constant 0 : index
    %c0_31 = arith.constant 0 : index
    %59 = vector.load %arg9[%c0_30, %c0_31] : memref<64x12xf32, #tpu.memory_space<vmem>>, vector<64x12xf32>
    tpu.vector_store %arg9[%c0_30, %c0_31], %58 {strides = array<i32>} : memref<64x12xf32, #tpu.memory_space<vmem>>, vector<64x12xf32>,
    return
  }
  func.func @transform_0(%arg0: i32) -> (i32, i32) {
    %c0_i32 = arith.constant 0 : i32
    %c0_i32_0 = arith.constant 0 : i32
    return %arg0, %c0_i32 : i32, i32
  }
  func.func @transform_1(%arg0: i32) -> (i32, i32) {
    %c0_i32 = arith.constant 0 : i32
    %c0_i32_0 = arith.constant 0 : i32
    return %arg0, %c0_i32 : i32, i32
  }
  func.func @transform_2(%arg0: i32) -> (i32, i32) {
    %c0_i32 = arith.constant 0 : i32
    %c0_i32_0 = arith.constant 0 : i32
    %c0_i32_1 = arith.constant 0 : i32
    return %c0_i32, %c0_i32_0 : i32, i32
  }
  func.func @transform_3(%arg0: i32) -> (i32, i32) {
    %c0_i32 = arith.constant 0 : i32
    %c0_i32_0 = arith.constant 0 : i32
    %c0_i32_1 = arith.constant 0 : i32
    return %c0_i32, %c0_i32_0 : i32, i32
  }
  func.func @transform_4(%arg0: i32) -> (i32, i32) {
    %c0_i32 = arith.constant 0 : i32
    %c0_i32_0 = arith.constant 0 : i32
    %c0_i32_1 = arith.constant 0 : i32
    return %c0_i32, %c0_i32_0 : i32, i32
  }
  func.func @transform_5(%arg0: i32) -> (i32, i32) {
    %c0_i32 = arith.constant 0 : i32
    %c0_i32_0 = arith.constant 0 : i32
    %c0_i32_1 = arith.constant 0 : i32
    return %c0_i32, %c0_i32_0 : i32, i32
  }
  func.func @transform_6(%arg0: i32) -> (i32, i32) {
    %c0_i32 = arith.constant 0 : i32
    %c0_i32_0 = arith.constant 0 : i32
    %c0_i32_1 = arith.constant 0 : i32
    return %c0_i32, %c0_i32_0 : i32, i32
  }
  func.func @transform_7(%arg0: i32) -> (i32, i32) {
    %c0_i32 = arith.constant 0 : i32
    %c0_i32_0 = arith.constant 0 : i32
    return %arg0, %c0_i32 : i32, i32
  }
  func.func @transform_8(%arg0: i32) -> (i32, i32) {
    %c0_i32 = arith.constant 0 : i32
    %c0_i32_0 = arith.constant 0 : i32
    return %arg0, %c0_i32 : i32, i32
  }
}

</mosaic_0001>

<llo_original>
// kernel: tpu_custom_call.1
$region0: #{tpu_custom_call.1}
  #allocation0 [shape = 'u32[]', space=smem, size = 0x4, offset = 0x4, fixed_abs, tag = 'smem constant byte address 0x4 - core index']
  #allocation1 [shape = 'u32[144,128]{1,0:T(1,128)}', space=vmem, size = 0x12000, scoped, tag = 'internal scratch']
  %s0 = inlined_call_operand.vmem [shape: f32[64,128], index: 0, kind: input, shape index: {}]
  %s1 = inlined_call_operand.vmem [shape: f32[64,12], index: 1, kind: input, shape index: {}]
  %s2 = inlined_call_operand.hbm [shape: f32[128,256], index: 2, kind: input, shape index: {}]
  %s3 = inlined_call_operand.vmem [shape: f32[12,256], index: 3, kind: input, shape index: {}]
  %s4 = inlined_call_operand.vmem [shape: f32[1,256], index: 4, kind: input, shape index: {}]
  %s5 = inlined_call_operand.vmem [shape: f32[128,12], index: 5, kind: input, shape index: {}]
  %s6 = inlined_call_operand.vmem [shape: f32[1,12], index: 6, kind: input, shape index: {}]
  %s7 = inlined_call_operand.hbm [shape: f32[64,128], index: 7, kind: output, shape index: {0}]
  %s8 = inlined_call_operand.vmem [shape: f32[64,12], index: 8, kind: output, shape index: {1}]
  %9 = xla_tuple %s7, %s8
  %s10 = sld [smem:[#allocation0]]
  $region50: #{tpu_custom_call.1} parent=0
    _
  %s12 = ssub.s32 1, %s10
  %s13 = scalar_select 0, %s12, %s10
  $region1: #{tpu_custom_call.1} parent=0
    #allocation2 [shape = 'u8[131072]{0}', space=vmem, size = 0x20000, scoped, tag = 'input window, operand 2, single buffered']
    #allocation3 [shape = 's32[1]{0}', space=sflag, size = 0x4, scoped, tag = 'scoped memory for tpu_custom_call.1']
    #allocation4 [shape = 's32[1]{0}', space=sflag, size = 0x4, scoped, tag = 'scoped memory for tpu_custom_call.1']
    #allocation5 [shape = 'u8[32768]{0}', space=vmem, size = 0x8000, scoped, tag = 'output window, operand 0, single buffered']
    %14 = vsyncpa [#allocation3], 0
    %15 = vsyncpa [#allocation4], 0
    // Predicated region
    $region2: #{tpu_custom_call.1} parent=1 // pred_check
      _
    $region3: #{tpu_custom_call.1} parent=1 // pred_check_branch
      %17 = sbr.rel (0) target = $region5
    $region4: #{tpu_custom_call.1} parent=1 // pred_region
      _
    $region5: #{tpu_custom_call.1} parent=1 // pred_fallthru
      _
    // Predicated region
    $region6: #{tpu_custom_call.1} parent=1 // pred_check
      _
    $region7: #{tpu_custom_call.1} parent=1 // pred_check_branch
      %19 = sbr.rel (0) target = $region9
    $region8: #{tpu_custom_call.1} parent=1 // pred_region
      _
    $region9: #{tpu_custom_call.1} parent=1 // pred_fallthru
      _
    // Predicated region
    $region10: #{tpu_custom_call.1} parent=1 // pred_check
      _
    $region11: #{tpu_custom_call.1} parent=1 // pred_check_branch
      %21 = sbr.rel (0) target = $region13
    $region12: #{tpu_custom_call.1} parent=1 // pred_region
      %s23 = ssub.s32 4096, 4096
      %24 = vsyncadd [#allocation3], %s23
      %s25 = sshll.u32 [#allocation2], 4
      %s26 = int_to_ptr.vmem [resolvable:$true] %s25
      %31 = dma.hbm_to_vmem [thread:$0]  %s2, 4096, %s26, [#allocation3], 256, 256, 16
    $region13: #{tpu_custom_call.1} parent=1 // pred_fallthru
      _
    // Predicated region
    $region14: #{tpu_custom_call.1} parent=1 // pred_check
      _
    $region15: #{tpu_custom_call.1} parent=1 // pred_check_branch
      %33 = sbr.rel (0) target = $region17
    $region16: #{tpu_custom_call.1} parent=1 // pred_region
      _
    $region17: #{tpu_custom_call.1} parent=1 // pred_fallthru
      _
    // Predicated region
    $region18: #{tpu_custom_call.1} parent=1 // pred_check
      _
    $region19: #{tpu_custom_call.1} parent=1 // pred_check_branch
      %35 = sbr.rel (0) target = $region21
    $region20: #{tpu_custom_call.1} parent=1 // pred_region
      _
    $region21: #{tpu_custom_call.1} parent=1 // pred_fallthru
      _
    // Predicated region
    $region22: #{tpu_custom_call.1} parent=1 // pred_check
      _
    $region23: #{tpu_custom_call.1} parent=1 // pred_check_branch
      %37 = sbr.rel (0) target = $region25
    $region24: #{tpu_custom_call.1} parent=1 // pred_region
      _
    $region25: #{tpu_custom_call.1} parent=1 // pred_fallthru
      _
    // Predicated region
    $region26: #{tpu_custom_call.1} parent=1 // pred_check
      _
    $region27: #{tpu_custom_call.1} parent=1 // pred_check_branch
      %39 = sbr.rel (0) target = $region29
    $region28: #{tpu_custom_call.1} parent=1 // pred_region
      _
    $region29: #{tpu_custom_call.1} parent=1 // pred_fallthru
      _
    // Predicated region
    $region30: #{tpu_custom_call.1} parent=1 // pred_check
      _
    $region31: #{tpu_custom_call.1} parent=1 // pred_check_branch
      %41 = sbr.rel (0) target = $region33
    $region32: #{tpu_custom_call.1} parent=1 // pred_region
      %42 = dma.done [#allocation3], 4096
    $region33: #{tpu_custom_call.1} parent=1 // pred_fallthru
      _
    %v43 = vld [vmem:[%s0] sm:$0xff]
    %v44 = vld [vmem:[%s0 + $0x8] sm:$0xff]
    %v45 = vld [vmem:[%s0 + $0x10] sm:$0xff]
    %v46 = vld [vmem:[%s0 + $0x18] sm:$0xff]
    %v47 = vld [vmem:[%s0 + $0x20] sm:$0xff]
    %v48 = vld [vmem:[%s0 + $0x28] sm:$0xff]
    %v49 = vld [vmem:[%s0 + $0x30] sm:$0xff]
    %v50 = vld [vmem:[%s0 + $0x38] sm:$0xff]
    %v51 = vld [vmem:[#allocation2] sm:$0xff]
    %v52 = vld [vmem:[#allocation2 + $0x8] sm:$0xff]
    %v53 = vld [vmem:[#allocation2 + $0x10] sm:$0xff]
    %v54 = vld [vmem:[#allocation2 + $0x18] sm:$0xff]
    %v55 = vld [vmem:[#allocation2 + $0x20] sm:$0xff]
    %v56 = vld [vmem:[#allocation2 + $0x28] sm:$0xff]
    %v57 = vld [vmem:[#allocation2 + $0x30] sm:$0xff]
    %v58 = vld [vmem:[#allocation2 + $0x38] sm:$0xff]
    %v59 = vld [vmem:[#allocation2 + $0x40] sm:$0xff]
    %v60 = vld [vmem:[#allocation2 + $0x48] sm:$0xff]
    %v61 = vld [vmem:[#allocation2 + $0x50] sm:$0xff]
    %v62 = vld [vmem:[#allocation2 + $0x58] sm:$0xff]
    %v63 = vld [vmem:[#allocation2 + $0x60] sm:$0xff]
    %v64 = vld [vmem:[#allocation2 + $0x68] sm:$0xff]
    %v65 = vld [vmem:[#allocation2 + $0x70] sm:$0xff]
    %v66 = vld [vmem:[#allocation2 + $0x78] sm:$0xff]
    %v67 = vld [vmem:[#allocation2 + $0x80] sm:$0xff]
    %v68 = vld [vmem:[#allocation2 + $0x88] sm:$0xff]
    %v69 = vld [vmem:[#allocation2 + $0x90] sm:$0xff]
    %v70 = vld [vmem:[#allocation2 + $0x98] sm:$0xff]
    %v71 = vld [vmem:[#allocation2 + $0xa0] sm:$0xff]
    %v72 = vld [vmem:[#allocation2 + $0xa8] sm:$0xff]
    %v73 = vld [vmem:[#allocation2 + $0xb0] sm:$0xff]
    %v74 = vld [vmem:[#allocation2 + $0xb8] sm:$0xff]
    %v75 = vld [vmem:[#allocation2 + $0xc0] sm:$0xff]
    %v76 = vld [vmem:[#allocation2 + $0xc8] sm:$0xff]
    %v77 = vld [vmem:[#allocation2 + $0xd0] sm:$0xff]
    %v78 = vld [vmem:[#allocation2 + $0xd8] sm:$0xff]
    %v79 = vld [vmem:[#allocation2 + $0xe0] sm:$0xff]
    %v80 = vld [vmem:[#allocation2 + $0xe8] sm:$0xff]
    %v81 = vld [vmem:[#allocation2 + $0xf0] sm:$0xff]
    %v82 = vld [vmem:[#allocation2 + $0xf8] sm:$0xff]
    %v83 = vld [vmem:[%s1] sm:$0xff]
    %v84 = vld [vmem:[%s1 + $0x8] sm:$0xff]
    %v85 = vld [vmem:[%s1 + $0x10] sm:$0xff]
    %v86 = vld [vmem:[%s1 + $0x18] sm:$0xff]
    %v87 = vld [vmem:[%s1 + $0x20] sm:$0xff]
    %v88 = vld [vmem:[%s1 + $0x28] sm:$0xff]
    %v89 = vld [vmem:[%s1 + $0x30] sm:$0xff]
    %v90 = vld [vmem:[%s1 + $0x38] sm:$0xff]
    %v91 = vld [vmem:[%s3] sm:$0xff]
    %v92 = vld [vmem:[%s3 + $0x8] sm:$0xff]
    %v93 = vld [vmem:[%s3 + $0x10] sm:$0xf]
    %v94 = vld [vmem:[%s3 + $0x18] sm:$0xf]
    %vm95 = vcmask 97280
    %v97 = vsel %vm95, %v83, 0
    %v100 = vsel %vm95, %v84, 0
    %v103 = vsel %vm95, %v85, 0
    %v106 = vsel %vm95, %v86, 0
    %v109 = vsel %vm95, %v87, 0
    %v112 = vsel %vm95, %v88, 0
    %v115 = vsel %vm95, %v89, 0
    %v118 = vsel %vm95, %v90, 0
    %vm120 = vcmask 1043456
    %v122 = vsel %vm120, %v93, 0
    %v125 = vsel %vm120, %v94, 0
    %127 = vmatprep.subr.mxu0 0.0
    %128 = vmatpush1.msra.mxu0 0.0
    %129 = vmatprep.subr.mxu0 0.0
    %130 = vmatpush1.msra.mxu0 0.0
    %131 = vmatprep.subr.mxu0 0.0
    %132 = vmatpush1.msra.mxu0 0.0
    %133 = vmatprep.subr.mxu0 0.0
    %134 = vmatpush1.msra.mxu0 0.0
    %135 = vmatprep.subr.mxu0 0.0
    %136 = vmatpush1.msra.mxu0 0.0
    %137 = vmatprep.subr.mxu0 0.0
    %138 = vmatpush1.msra.mxu0 0.0
    %139 = vmatprep.subr.mxu0 0.0
    %140 = vmatpush1.msra.mxu0 0.0
    %141 = vmatprep.subr.mxu0 0.0
    %142 = vmatpush1.msra.mxu0 0.0
    %143 = vmatprep.subr.mxu0 0.0
    %144 = vmatpush1.msra.mxu0 0.0
    %145 = vmatprep.subr.mxu0 0.0
    %146 = vmatpush1.msra.mxu0 0.0
    %147 = vmatprep.subr.mxu0 0.0
    %148 = vmatpush1.msra.mxu0 0.0
    %149 = vmatprep.subr.mxu0 0.0
    %150 = vmatpush1.msra.mxu0 0.0
    %151 = vmatprep.subr.mxu0 0.0
    %152 = vmatpush1.msra.mxu0 0.0
    %153 = vmatprep.subr.mxu0 0.0
    %154 = vmatpush1.msra.mxu0 0.0
    %155 = vmatprep.subr.mxu0 %v125
    %156 = vmatpush1.msra.mxu0 %v122
    %157 = vmatprep.subr.mxu0 %v92
    %158 = vmatpush1.msra.mxu0 %v91
    %159 = vmatprep.subr.mxu0 0.0
    %160 = vmatpush2.msra.mxu0 0.0
    %161 = vmatprep.subr.mxu0 0.0
    %162 = vmatpush2.msra.mxu0 0.0
    %163 = vmatprep.subr.mxu0 0.0
    %164 = vmatpush2.msra.mxu0 0.0
    %165 = vmatprep.subr.mxu0 0.0
    %166 = vmatpush2.msra.mxu0 0.0
    %167 = vmatprep.subr.mxu0 0.0
    %168 = vmatpush2.msra.mxu0 0.0
    %169 = vmatprep.subr.mxu0 0.0
    %170 = vmatpush2.msra.mxu0 0.0
    %171 = vmatprep.subr.mxu0 0.0
    %172 = vmatpush2.msra.mxu0 0.0
    %173 = vmatprep.subr.mxu0 0.0
    %174 = vmatpush2.msra.mxu0 0.0
    %175 = vmatprep.subr.mxu0 0.0
    %176 = vmatpush2.msra.mxu0 0.0
    %177 = vmatprep.subr.mxu0 0.0
    %178 = vmatpush2.msra.mxu0 0.0
    %179 = vmatprep.subr.mxu0 0.0
    %180 = vmatpush2.msra.mxu0 0.0
    %181 = vmatprep.subr.mxu0 0.0
    %182 = vmatpush2.msra.mxu0 0.0
    %183 = vmatprep.subr.mxu0 0.0
    %184 = vmatpush2.msra.mxu0 0.0
    %185 = vmatprep.subr.mxu0 0.0
    %186 = vmatpush2.msra.mxu0 0.0
    %187 = vmatprep.subr.mxu0 0.0
    %188 = vmatpush2.msra.mxu0 0.0
    %189 = vmatprep.subr.mxu0 0.0
    %190 = vmatpush2.msra.mxu0 0.0
    %191 = vmatprep.mubr.f32.mxu0 0.0
    %192 = vmatmul.mubr.f32.gmra.mxu0 %v97
    %v193 = vpop.f32.mrf.mxu0
    %v194 = vadd.f32 0.0, %v193
    %v195 = vpop.f32.mrf.mxu0
    %v196 = vadd.f32 0.0, %v195
    %197 = vmatprep.mubr.f32.mxu0 0.0
    %198 = vmatmul.mubr.f32.gmra.mxu0 %v100
    %v199 = vpop.f32.mrf.mxu0
    %v200 = vadd.f32 0.0, %v199
    %v201 = vpop.f32.mrf.mxu0
    %v202 = vadd.f32 0.0, %v201
    %203 = vmatprep.mubr.f32.mxu0 0.0
    %204 = vmatmul.mubr.f32.gmra.mxu0 %v103
    %v205 = vpop.f32.mrf.mxu0
    %v206 = vadd.f32 0.0, %v205
    %v207 = vpop.f32.mrf.mxu0
    %v208 = vadd.f32 0.0, %v207
    %209 = vmatprep.mubr.f32.mxu0 0.0
    %210 = vmatmul.mubr.f32.gmra.mxu0 %v106
    %v211 = vpop.f32.mrf.mxu0
    %v212 = vadd.f32 0.0, %v211
    %v213 = vpop.f32.mrf.mxu0
    %v214 = vadd.f32 0.0, %v213
    %215 = vmatprep.mubr.f32.mxu0 0.0
    %216 = vmatmul.mubr.f32.gmra.mxu0 %v109
    %v217 = vpop.f32.mrf.mxu0
    %v218 = vadd.f32 0.0, %v217
    %v219 = vpop.f32.mrf.mxu0
    %v220 = vadd.f32 0.0, %v219
    %221 = vmatprep.mubr.f32.mxu0 0.0
    %222 = vmatmul.mubr.f32.gmra.mxu0 %v112
    %v223 = vpop.f32.mrf.mxu0
    %v224 = vadd.f32 0.0, %v223
    %v225 = vpop.f32.mrf.mxu0
    %v226 = vadd.f32 0.0, %v225
    %227 = vmatprep.mubr.f32.mxu0 0.0
    %228 = vmatmul.mubr.f32.gmra.mxu0 %v115
    %v229 = vpop.f32.mrf.mxu0
    %v230 = vadd.f32 0.0, %v229
    %v231 = vpop.f32.mrf.mxu0
    %v232 = vadd.f32 0.0, %v231
    %233 = vmatprep.mubr.f32.mxu0 0.0
    %234 = vmatmul.mubr.f32.gmra.mxu0 %v118
    %v235 = vpop.f32.mrf.mxu0
    %v236 = vadd.f32 0.0, %v235
    %v237 = vpop.f32.mrf.mxu0
    %v238 = vadd.f32 0.0, %v237
    %239 = vdwg.mxu0
    %240 = vmatprep.subr.mxu0 %v82
    %241 = vmatpush1.msra.mxu0 %v81
    %242 = vmatprep.subr.mxu0 %v80
    %243 = vmatpush1.msra.mxu0 %v79
    %244 = vmatprep.subr.mxu0 %v78
    %245 = vmatpush1.msra.mxu0 %v77
    %246 = vmatprep.subr.mxu0 %v76
    %247 = vmatpush1.msra.mxu0 %v75
    %248 = vmatprep.subr.mxu0 %v74
    %249 = vmatpush1.msra.mxu0 %v73
    %250 = vmatprep.subr.mxu0 %v72
    %251 = vmatpush1.msra.mxu0 %v71
    %252 = vmatprep.subr.mxu0 %v70
    %253 = vmatpush1.msra.mxu0 %v69
    %254 = vmatprep.subr.mxu0 %v68
    %255 = vmatpush1.msra.mxu0 %v67
    %256 = vmatprep.subr.mxu0 %v66
    %257 = vmatpush1.msra.mxu0 %v65
    %258 = vmatprep.subr.mxu0 %v64
    %259 = vmatpush1.msra.mxu0 %v63
    %260 = vmatprep.subr.mxu0 %v62
    %261 = vmatpush1.msra.mxu0 %v61
    %262 = vmatprep.subr.mxu0 %v60
    %263 = vmatpush1.msra.mxu0 %v59
    %264 = vmatprep.subr.mxu0 %v58
    %265 = vmatpush1.msra.mxu0 %v57
    %266 = vmatprep.subr.mxu0 %v56
    %267 = vmatpush1.msra.mxu0 %v55
    %268 = vmatprep.subr.mxu0 %v54
    %269 = vmatpush1.msra.mxu0 %v53
    %270 = vmatprep.subr.mxu0 %v52
    %271 = vmatpush1.msra.mxu0 %v51
    %272 = vmatprep.subr.mxu0 0.0
    %273 = vmatpush2.msra.mxu0 0.0
    %274 = vmatprep.subr.mxu0 0.0
    %275 = vmatpush2.msra.mxu0 0.0
    %276 = vmatprep.subr.mxu0 0.0
    %277 = vmatpush2.msra.mxu0 0.0
    %278 = vmatprep.subr.mxu0 0.0
    %279 = vmatpush2.msra.mxu0 0.0
    %280 = vmatprep.subr.mxu0 0.0
    %281 = vmatpush2.msra.mxu0 0.0
    %282 = vmatprep.subr.mxu0 0.0
    %283 = vmatpush2.msra.mxu0 0.0
    %284 = vmatprep.subr.mxu0 0.0
    %285 = vmatpush2.msra.mxu0 0.0
    %286 = vmatprep.subr.mxu0 0.0
    %287 = vmatpush2.msra.mxu0 0.0
    %288 = vmatprep.subr.mxu0 0.0
    %289 = vmatpush2.msra.mxu0 0.0
    %290 = vmatprep.subr.mxu0 0.0
    %291 = vmatpush2.msra.mxu0 0.0
    %292 = vmatprep.subr.mxu0 0.0
    %293 = vmatpush2.msra.mxu0 0.0
    %294 = vmatprep.subr.mxu0 0.0
    %295 = vmatpush2.msra.mxu0 0.0
    %296 = vmatprep.subr.mxu0 0.0
    %297 = vmatpush2.msra.mxu0 0.0
    %298 = vmatprep.subr.mxu0 0.0
    %299 = vmatpush2.msra.mxu0 0.0
    %300 = vmatprep.subr.mxu0 0.0
    %301 = vmatpush2.msra.mxu0 0.0
    %302 = vmatprep.subr.mxu0 0.0
    %303 = vmatpush2.msra.mxu0 0.0
    %304 = vmatprep.mubr.f32.mxu0 0.0
    %305 = vmatmul.mubr.f32.gmra.mxu0 %v43
    %v306 = vpop.f32.mrf.mxu0
    %v307 = vadd.f32 %v194, %v306
    %v308 = vpop.f32.mrf.mxu0
    %v309 = vadd.f32 %v196, %v308
    %310 = vmatprep.mubr.f32.mxu0 0.0
    %311 = vmatmul.mubr.f32.gmra.mxu0 %v44
    %v312 = vpop.f32.mrf.mxu0
    %v313 = vadd.f32 %v200, %v312
    %v314 = vpop.f32.mrf.mxu0
    %v315 = vadd.f32 %v202, %v314
    %316 = vmatprep.mubr.f32.mxu0 0.0
    %317 = vmatmul.mubr.f32.gmra.mxu0 %v45
    %v318 = vpop.f32.mrf.mxu0
    %v319 = vadd.f32 %v206, %v318
    %v320 = vpop.f32.mrf.mxu0
    %v321 = vadd.f32 %v208, %v320
    %322 = vmatprep.mubr.f32.mxu0 0.0
    %323 = vmatmul.mubr.f32.gmra.mxu0 %v46
    %v324 = vpop.f32.mrf.mxu0
    %v325 = vadd.f32 %v212, %v324
    %v326 = vpop.f32.mrf.mxu0
    %v327 = vadd.f32 %v214, %v326
    %328 = vmatprep.mubr.f32.mxu0 0.0
    %329 = vmatmul.mubr.f32.gmra.mxu0 %v47
    %v330 = vpop.f32.mrf.mxu0
    %v331 = vadd.f32 %v218, %v330
    %v332 = vpop.f32.mrf.mxu0
    %v333 = vadd.f32 %v220, %v332
    %334 = vmatprep.mubr.f32.mxu0 0.0
    %335 = vmatmul.mubr.f32.gmra.mxu0 %v48
    %v336 = vpop.f32.mrf.mxu0
    %v337 = vadd.f32 %v224, %v336
    %v338 = vpop.f32.mrf.mxu0
    %v339 = vadd.f32 %v226, %v338
    %340 = vmatprep.mubr.f32.mxu0 0.0
    %341 = vmatmul.mubr.f32.gmra.mxu0 %v49
    %v342 = vpop.f32.mrf.mxu0
    %v343 = vadd.f32 %v230, %v342
    %v344 = vpop.f32.mrf.mxu0
    %v345 = vadd.f32 %v232, %v344
    %346 = vmatprep.mubr.f32.mxu0 0.0
    %347 = vmatmul.mubr.f32.gmra.mxu0 %v50
    %v348 = vpop.f32.mrf.mxu0
    %v349 = vadd.f32 %v236, %v348
    %v350 = vpop.f32.mrf.mxu0
    %v351 = vadd.f32 %v238, %v350
    %352 = vdwg.mxu0
    %v353 = vld [vmem:[%s4] sm:$0x3]
    %v355 = vlaneseq
    %v356 = vshrl.u32 %v355, 7
    %v357 = vsub.s32 0, %v356
    %v358 = vrot.slane %v353, %v357
    %v359 = vlaneseq
    %v360 = vshrl.u32 %v359, 7
    %v361 = vsub.s32 1, %v360
    %v362 = vrot.slane %v353, %v361
    %v365 = vadd.f32 %v307, %v358
    %v366 = vadd.f32 %v309, %v362
    %v367 = vadd.f32 %v313, %v358
    %v368 = vadd.f32 %v315, %v362
    %v369 = vadd.f32 %v319, %v358
    %v370 = vadd.f32 %v321, %v362
    %v371 = vadd.f32 %v325, %v358
    %v372 = vadd.f32 %v327, %v362
    %v373 = vadd.f32 %v331, %v358
    %v374 = vadd.f32 %v333, %v362
    %v375 = vadd.f32 %v337, %v358
    %v376 = vadd.f32 %v339, %v362
    %v377 = vadd.f32 %v343, %v358
    %v378 = vadd.f32 %v345, %v362
    %v379 = vadd.f32 %v349, %v358
    %v380 = vadd.f32 %v351, %v362
    %v381 = vmax.f32 %v365, -50.0
    %v382 = vmax.f32 %v366, -50.0
    %v383 = vmax.f32 %v367, -50.0
    %v384 = vmax.f32 %v368, -50.0
    %v385 = vmax.f32 %v369, -50.0
    %v386 = vmax.f32 %v370, -50.0
    %v387 = vmax.f32 %v371, -50.0
    %v388 = vmax.f32 %v372, -50.0
    %v389 = vmax.f32 %v373, -50.0
    %v390 = vmax.f32 %v374, -50.0
    %v391 = vmax.f32 %v375, -50.0
    %v392 = vmax.f32 %v376, -50.0
    %v393 = vmax.f32 %v377, -50.0
    %v394 = vmax.f32 %v378, -50.0
    %v395 = vmax.f32 %v379, -50.0
    %v396 = vmax.f32 %v380, -50.0
    %v397 = vmin.f32 %v381, 50.0
    %v398 = vmin.f32 %v382, 50.0
    %v399 = vmin.f32 %v383, 50.0
    %v400 = vmin.f32 %v384, 50.0
    %v401 = vmin.f32 %v385, 50.0
    %v402 = vmin.f32 %v386, 50.0
    %v403 = vmin.f32 %v387, 50.0
    %v404 = vmin.f32 %v388, 50.0
    %v405 = vmin.f32 %v389, 50.0
    %v406 = vmin.f32 %v390, 50.0
    %v407 = vmin.f32 %v391, 50.0
    %v408 = vmin.f32 %v392, 50.0
    %v409 = vmin.f32 %v393, 50.0
    %v410 = vmin.f32 %v394, 50.0
    %v411 = vmin.f32 %v395, 50.0
    %v412 = vmin.f32 %v396, 50.0
    %v413 = vand.u32 2147483647, %v397
    %v414 = vand.u32 2147483647, %v398
    %v415 = vand.u32 2147483647, %v399
    %v416 = vand.u32 2147483647, %v400
    %v417 = vand.u32 2147483647, %v401
    %v418 = vand.u32 2147483647, %v402
    %v419 = vand.u32 2147483647, %v403
    %v420 = vand.u32 2147483647, %v404
    %v421 = vand.u32 2147483647, %v405
    %v422 = vand.u32 2147483647, %v406
    %v423 = vand.u32 2147483647, %v407
    %v424 = vand.u32 2147483647, %v408
    %v425 = vand.u32 2147483647, %v409
    %v426 = vand.u32 2147483647, %v410
    %v427 = vand.u32 2147483647, %v411
    %v428 = vand.u32 2147483647, %v412
    %v429 = vsub.f32 0.0, %v413
    %v430 = vsub.f32 0.0, %v414
    %v431 = vsub.f32 0.0, %v415
    %v432 = vsub.f32 0.0, %v416
    %v433 = vsub.f32 0.0, %v417
    %v434 = vsub.f32 0.0, %v418
    %v435 = vsub.f32 0.0, %v419
    %v436 = vsub.f32 0.0, %v420
    %v437 = vsub.f32 0.0, %v421
    %v438 = vsub.f32 0.0, %v422
    %v439 = vsub.f32 0.0, %v423
    %v440 = vsub.f32 0.0, %v424
    %v441 = vsub.f32 0.0, %v425
    %v442 = vsub.f32 0.0, %v426
    %v443 = vsub.f32 0.0, %v427
    %v444 = vsub.f32 0.0, %v428
    %v445 = vmul.f32 %v429, 1.442695
    %v446 = vpow.pop %v445
    %v447 = vmul.f32 %v430, 1.442695
    %v448 = vpow.pop %v447
    %v449 = vmul.f32 %v431, 1.442695
    %v450 = vpow.pop %v449
    %v451 = vmul.f32 %v432, 1.442695
    %v452 = vpow.pop %v451
    %v453 = vmul.f32 %v433, 1.442695
    %v454 = vpow.pop %v453
    %v455 = vmul.f32 %v434, 1.442695
    %v456 = vpow.pop %v455
    %v457 = vmul.f32 %v435, 1.442695
    %v458 = vpow.pop %v457
    %v459 = vmul.f32 %v436, 1.442695
    %v460 = vpow.pop %v459
    %v461 = vmul.f32 %v437, 1.442695
    %v462 = vpow.pop %v461
    %v463 = vmul.f32 %v438, 1.442695
    %v464 = vpow.pop %v463
    %v465 = vmul.f32 %v439, 1.442695
    %v466 = vpow.pop %v465
    %v467 = vmul.f32 %v440, 1.442695
    %v468 = vpow.pop %v467
    %v469 = vmul.f32 %v441, 1.442695
    %v470 = vpow.pop %v469
    %v471 = vmul.f32 %v442, 1.442695
    %v472 = vpow.pop %v471
    %v473 = vmul.f32 %v443, 1.442695
    %v474 = vpow.pop %v473
    %v475 = vmul.f32 %v444, 1.442695
    %v476 = vpow.pop %v475
    %v477 = vadd.f32 %v446, 1.0
    %v478 = vadd.f32 %v450, 1.0
    %v479 = vadd.f32 %v454, 1.0
    %v480 = vadd.f32 %v458, 1.0
    %v481 = vadd.f32 %v462, 1.0
    %v482 = vadd.f32 %v466, 1.0
    %v483 = vadd.f32 %v470, 1.0
    %v484 = vadd.f32 %v474, 1.0
    %v485 = vrcp.pop %v477
    %v486 = vrcp.pop %v478
    %v487 = vrcp.pop %v479
    %v488 = vrcp.pop %v480
    %v489 = vrcp.pop %v481
    %v490 = vrcp.pop %v482
    %v491 = vrcp.pop %v483
    %v492 = vrcp.pop %v484
    %vm493 = vcmp.ge.f32.partialorder %v397, 0.0
    %vm494 = vcmp.ge.f32.partialorder %v399, 0.0
    %vm495 = vcmp.ge.f32.partialorder %v401, 0.0
    %vm496 = vcmp.ge.f32.partialorder %v403, 0.0
    %vm497 = vcmp.ge.f32.partialorder %v405, 0.0
    %vm498 = vcmp.ge.f32.partialorder %v407, 0.0
    %vm499 = vcmp.ge.f32.partialorder %v409, 0.0
    %vm500 = vcmp.ge.f32.partialorder %v411, 0.0
    %v501 = vmul.f32 %v446, %v485
    %v502 = vmul.f32 %v450, %v486
    %v503 = vmul.f32 %v454, %v487
    %v504 = vmul.f32 %v458, %v488
    %v505 = vmul.f32 %v462, %v489
    %v506 = vmul.f32 %v466, %v490
    %v507 = vmul.f32 %v470, %v491
    %v508 = vmul.f32 %v474, %v492
    %v509 = vsel %vm493, %v485, %v501
    %v510 = vsel %vm494, %v486, %v502
    %v511 = vsel %vm495, %v487, %v503
    %v512 = vsel %vm496, %v488, %v504
    %v513 = vsel %vm497, %v489, %v505
    %v514 = vsel %vm498, %v490, %v506
    %v515 = vsel %vm499, %v491, %v507
    %v516 = vsel %vm500, %v492, %v508
    %v517 = vmax.f32 %v398, 0.0
    %v518 = vmax.f32 %v400, 0.0
    %v519 = vmax.f32 %v402, 0.0
    %v520 = vmax.f32 %v404, 0.0
    %v521 = vmax.f32 %v406, 0.0
    %v522 = vmax.f32 %v408, 0.0
    %v523 = vmax.f32 %v410, 0.0
    %v524 = vmax.f32 %v412, 0.0
    %v525 = vadd.f32 %v448, 1.0
    %v526 = vlog2.pop %v525
    %v527 = vmul.f32 %v526, 0.6931472
    %v528 = vmul.f32 -0.5, %v448
    %v529 = vadd.f32 %v528, 1.0
    %v530 = vmul.f32 %v529, %v448
    %v531 = vand.u32 2147483647, %v448
    %vm532 = vcmp.lt.f32.partialorder %v531, 0.0004427343
    %v533 = vsel %vm532, %v530, %v527
    %v534 = vadd.f32 %v452, 1.0
    %v535 = vlog2.pop %v534
    %v536 = vmul.f32 %v535, 0.6931472
    %v537 = vmul.f32 -0.5, %v452
    %v538 = vadd.f32 %v537, 1.0
    %v539 = vmul.f32 %v538, %v452
    %v540 = vand.u32 2147483647, %v452
    %vm541 = vcmp.lt.f32.partialorder %v540, 0.0004427343
    %v542 = vsel %vm541, %v539, %v536
    %v543 = vadd.f32 %v456, 1.0
    %v544 = vlog2.pop %v543
    %v545 = vmul.f32 %v544, 0.6931472
    %v546 = vmul.f32 -0.5, %v456
    %v547 = vadd.f32 %v546, 1.0
    %v548 = vmul.f32 %v547, %v456
    %v549 = vand.u32 2147483647, %v456
    %vm550 = vcmp.lt.f32.partialorder %v549, 0.0004427343
    %v551 = vsel %vm550, %v548, %v545
    %v552 = vadd.f32 %v460, 1.0
    %v553 = vlog2.pop %v552
    %v554 = vmul.f32 %v553, 0.6931472
    %v555 = vmul.f32 -0.5, %v460
    %v556 = vadd.f32 %v555, 1.0
    %v557 = vmul.f32 %v556, %v460
    %v558 = vand.u32 2147483647, %v460
    %vm559 = vcmp.lt.f32.partialorder %v558, 0.0004427343
    %v560 = vsel %vm559, %v557, %v554
    %v561 = vadd.f32 %v464, 1.0
    %v562 = vlog2.pop %v561
    %v563 = vmul.f32 %v562, 0.6931472
    %v564 = vmul.f32 -0.5, %v464
    %v565 = vadd.f32 %v564, 1.0
    %v566 = vmul.f32 %v565, %v464
    %v567 = vand.u32 2147483647, %v464
    %vm568 = vcmp.lt.f32.partialorder %v567, 0.0004427343
    %v569 = vsel %vm568, %v566, %v563
    %v570 = vadd.f32 %v468, 1.0
    %v571 = vlog2.pop %v570
    %v572 = vmul.f32 %v571, 0.6931472
    %v573 = vmul.f32 -0.5, %v468
    %v574 = vadd.f32 %v573, 1.0
    %v575 = vmul.f32 %v574, %v468
    %v576 = vand.u32 2147483647, %v468
    %vm577 = vcmp.lt.f32.partialorder %v576, 0.0004427343
    %v578 = vsel %vm577, %v575, %v572
    %v579 = vadd.f32 %v472, 1.0
    %v580 = vlog2.pop %v579
    %v581 = vmul.f32 %v580, 0.6931472
    %v582 = vmul.f32 -0.5, %v472
    %v583 = vadd.f32 %v582, 1.0
    %v584 = vmul.f32 %v583, %v472
    %v585 = vand.u32 2147483647, %v472
    %vm586 = vcmp.lt.f32.partialorder %v585, 0.0004427343
    %v587 = vsel %vm586, %v584, %v581
    %v588 = vadd.f32 %v476, 1.0
    %v589 = vlog2.pop %v588
    %v590 = vmul.f32 %v589, 0.6931472
    %v591 = vmul.f32 -0.5, %v476
    %v592 = vadd.f32 %v591, 1.0
    %v593 = vmul.f32 %v592, %v476
    %v594 = vand.u32 2147483647, %v476
    %vm595 = vcmp.lt.f32.partialorder %v594, 0.0004427343
    %v596 = vsel %vm595, %v593, %v590
    %v597 = vadd.f32 %v517, %v533
    %v598 = vadd.f32 %v518, %v542
    %v599 = vadd.f32 %v519, %v551
    %v600 = vadd.f32 %v520, %v560
    %v601 = vadd.f32 %v521, %v569
    %v602 = vadd.f32 %v522, %v578
    %v603 = vadd.f32 %v523, %v587
    %v604 = vadd.f32 %v524, %v596
    %v605 = vmul.f32 %v597, 9.9
    %v606 = vmul.f32 %v598, 9.9
    %v607 = vmul.f32 %v599, 9.9
    %v608 = vmul.f32 %v600, 9.9
    %v609 = vmul.f32 %v601, 9.9
    %v610 = vmul.f32 %v602, 9.9
    %v611 = vmul.f32 %v603, 9.9
    %v612 = vmul.f32 %v604, 9.9
    %v613 = vadd.f32 %v605, 0.1
    %v614 = vadd.f32 %v606, 0.1
    %v615 = vadd.f32 %v607, 0.1
    %v616 = vadd.f32 %v608, 0.1
    %v617 = vadd.f32 %v609, 0.1
    %v618 = vadd.f32 %v610, 0.1
    %v619 = vadd.f32 %v611, 0.1
    %v620 = vadd.f32 %v612, 0.1
    %v621 = vmax.f32 %v613, 1e-06
    %v622 = vmax.f32 %v614, 1e-06
    %v623 = vmax.f32 %v615, 1e-06
    %v624 = vmax.f32 %v616, 1e-06
    %v625 = vmax.f32 %v617, 1e-06
    %v626 = vmax.f32 %v618, 1e-06
    %v627 = vmax.f32 %v619, 1e-06
    %v628 = vmax.f32 %v620, 1e-06
    %v629 = vrcp.pop %v621
    %v630 = vrcp.pop %v622
    %v631 = vrcp.pop %v623
    %v632 = vrcp.pop %v624
    %v633 = vrcp.pop %v625
    %v634 = vrcp.pop %v626
    %v635 = vrcp.pop %v627
    %v636 = vrcp.pop %v628
    %v637 = vmul.f32 %v43, %v629
    %v638 = vmul.f32 %v44, %v630
    %v639 = vmul.f32 %v45, %v631
    %v640 = vmul.f32 %v46, %v632
    %v641 = vmul.f32 %v47, %v633
    %v642 = vmul.f32 %v48, %v634
    %v643 = vmul.f32 %v49, %v635
    %v644 = vmul.f32 %v50, %v636
    %v645 = vsub.f32 %v509, %v637
    %v646 = vsub.f32 %v510, %v638
    %v647 = vsub.f32 %v511, %v639
    %v648 = vsub.f32 %v512, %v640
    %v649 = vsub.f32 %v513, %v641
    %v650 = vsub.f32 %v514, %v642
    %v651 = vsub.f32 %v515, %v643
    %v652 = vsub.f32 %v516, %v644
    %v653 = vmul.f32 %v645, 0.1
    %v654 = vmul.f32 %v646, 0.1
    %v655 = vmul.f32 %v647, 0.1
    %v656 = vmul.f32 %v648, 0.1
    %v657 = vmul.f32 %v649, 0.1
    %v658 = vmul.f32 %v650, 0.1
    %v659 = vmul.f32 %v651, 0.1
    %v660 = vmul.f32 %v652, 0.1
    %v661 = vadd.f32 %v43, %v653
    %v662 = vadd.f32 %v44, %v654
    %v663 = vadd.f32 %v45, %v655
    %v664 = vadd.f32 %v46, %v656
    %v665 = vadd.f32 %v47, %v657
    %v666 = vadd.f32 %v48, %v658
    %v667 = vadd.f32 %v49, %v659
    %v668 = vadd.f32 %v50, %v660
    %vm669 = vcmp.ne.f32.partialorder %v661, %v661
    %vm670 = vcmp.ne.f32.partialorder %v662, %v662
    %vm671 = vcmp.ne.f32.partialorder %v663, %v663
    %vm672 = vcmp.ne.f32.partialorder %v664, %v664
    %vm673 = vcmp.ne.f32.partialorder %v665, %v665
    %vm674 = vcmp.ne.f32.partialorder %v666, %v666
    %vm675 = vcmp.ne.f32.partialorder %v667, %v667
    %vm676 = vcmp.ne.f32.partialorder %v668, %v668
    %v677 = vsel %vm669, 0.0, %v661
    %v678 = vsel %vm670, 0.0, %v662
    %v679 = vsel %vm671, 0.0, %v663
    %v680 = vsel %vm672, 0.0, %v664
    %v681 = vsel %vm673, 0.0, %v665
    %v682 = vsel %vm674, 0.0, %v666
    %v683 = vsel %vm675, 0.0, %v667
    %v684 = vsel %vm676, 0.0, %v668
    %v685 = vmax.f32 %v677, -3.4028235e+38
    %v686 = vmax.f32 %v678, -3.4028235e+38
    %v687 = vmax.f32 %v679, -3.4028235e+38
    %v688 = vmax.f32 %v680, -3.4028235e+38
    %v689 = vmax.f32 %v681, -3.4028235e+38
    %v690 = vmax.f32 %v682, -3.4028235e+38
    %v691 = vmax.f32 %v683, -3.4028235e+38
    %v692 = vmax.f32 %v684, -3.4028235e+38
    %v693 = vmin.f32 %v685, 3.4028235e+38
    %v694 = vmin.f32 %v686, 3.4028235e+38
    %v695 = vmin.f32 %v687, 3.4028235e+38
    %v696 = vmin.f32 %v688, 3.4028235e+38
    %v697 = vmin.f32 %v689, 3.4028235e+38
    %v698 = vmin.f32 %v690, 3.4028235e+38
    %v699 = vmin.f32 %v691, 3.4028235e+38
    %v700 = vmin.f32 %v692, 3.4028235e+38
    %701 = vst [vmem:[#allocation5] sm:$0xff] %v693
    %702 = vst [vmem:[#allocation5 + $0x8] sm:$0xff] %v694
    %703 = vst [vmem:[#allocation5 + $0x10] sm:$0xff] %v695
    %704 = vst [vmem:[#allocation5 + $0x18] sm:$0xff] %v696
    %705 = vst [vmem:[#allocation5 + $0x20] sm:$0xff] %v697
    %706 = vst [vmem:[#allocation5 + $0x28] sm:$0xff] %v698
    %707 = vst [vmem:[#allocation5 + $0x30] sm:$0xff] %v699
    %708 = vst [vmem:[#allocation5 + $0x38] sm:$0xff] %v700
    %v709 = vld [vmem:[%s5] sm:$0xff]
    %v710 = vld [vmem:[%s5 + $0x8] sm:$0xff]
    %v711 = vld [vmem:[%s5 + $0x10] sm:$0xff]
    %v712 = vld [vmem:[%s5 + $0x18] sm:$0xff]
    %v713 = vld [vmem:[%s5 + $0x20] sm:$0xff]
    %v714 = vld [vmem:[%s5 + $0x28] sm:$0xff]
    %v715 = vld [vmem:[%s5 + $0x30] sm:$0xff]
    %v716 = vld [vmem:[%s5 + $0x38] sm:$0xff]
    %v717 = vld [vmem:[%s5 + $0x40] sm:$0xff]
    %v718 = vld [vmem:[%s5 + $0x48] sm:$0xff]
    %v719 = vld [vmem:[%s5 + $0x50] sm:$0xff]
    %v720 = vld [vmem:[%s5 + $0x58] sm:$0xff]
    %v721 = vld [vmem:[%s5 + $0x60] sm:$0xff]
    %v722 = vld [vmem:[%s5 + $0x68] sm:$0xff]
    %v723 = vld [vmem:[%s5 + $0x70] sm:$0xff]
    %v724 = vld [vmem:[%s5 + $0x78] sm:$0xff]
    %v725 = vld [vmem:[%s6] sm:$0x1]
    %v727 = vlaneseq
    %v728 = vshrl.u32 %v727, 7
    %v729 = vsub.s32 0, %v728
    %v730 = vrot.slane %v725, %v729
    %732 = vmatprep.subr.mxu0 0.0
    %733 = vmatpush1.msra.mxu0 %v724
    %734 = vmatprep.subr.mxu0 0.0
    %735 = vmatpush1.msra.mxu0 %v723
    %736 = vmatprep.subr.mxu0 0.0
    %737 = vmatpush1.msra.mxu0 %v722
    %738 = vmatprep.subr.mxu0 0.0
    %739 = vmatpush1.msra.mxu0 %v721
    %740 = vmatprep.subr.mxu0 0.0
    %741 = vmatpush1.msra.mxu0 %v720
    %742 = vmatprep.subr.mxu0 0.0
    %743 = vmatpush1.msra.mxu0 %v719
    %744 = vmatprep.subr.mxu0 0.0
    %745 = vmatpush1.msra.mxu0 %v718
    %746 = vmatprep.subr.mxu0 0.0
    %747 = vmatpush1.msra.mxu0 %v717
    %748 = vmatprep.subr.mxu0 0.0
    %749 = vmatpush1.msra.mxu0 %v716
    %750 = vmatprep.subr.mxu0 0.0
    %751 = vmatpush1.msra.mxu0 %v715
    %752 = vmatprep.subr.mxu0 0.0
    %753 = vmatpush1.msra.mxu0 %v714
    %754 = vmatprep.subr.mxu0 0.0
    %755 = vmatpush1.msra.mxu0 %v713
    %756 = vmatprep.subr.mxu0 0.0
    %757 = vmatpush1.msra.mxu0 %v712
    %758 = vmatprep.subr.mxu0 0.0
    %759 = vmatpush1.msra.mxu0 %v711
    %760 = vmatprep.subr.mxu0 0.0
    %761 = vmatpush1.msra.mxu0 %v710
    %762 = vmatprep.subr.mxu0 0.0
    %763 = vmatpush1.msra.mxu0 %v709
    %764 = vmatprep.subr.mxu0 0.0
    %765 = vmatpush2.msra.mxu0 0.0
    %766 = vmatprep.subr.mxu0 0.0
    %767 = vmatpush2.msra.mxu0 0.0
    %768 = vmatprep.subr.mxu0 0.0
    %769 = vmatpush2.msra.mxu0 0.0
    %770 = vmatprep.subr.mxu0 0.0
    %771 = vmatpush2.msra.mxu0 0.0
    %772 = vmatprep.subr.mxu0 0.0
    %773 = vmatpush2.msra.mxu0 0.0
    %774 = vmatprep.subr.mxu0 0.0
    %775 = vmatpush2.msra.mxu0 0.0
    %776 = vmatprep.subr.mxu0 0.0
    %777 = vmatpush2.msra.mxu0 0.0
    %778 = vmatprep.subr.mxu0 0.0
    %779 = vmatpush2.msra.mxu0 0.0
    %780 = vmatprep.subr.mxu0 0.0
    %781 = vmatpush2.msra.mxu0 0.0
    %782 = vmatprep.subr.mxu0 0.0
    %783 = vmatpush2.msra.mxu0 0.0
    %784 = vmatprep.subr.mxu0 0.0
    %785 = vmatpush2.msra.mxu0 0.0
    %786 = vmatprep.subr.mxu0 0.0
    %787 = vmatpush2.msra.mxu0 0.0
    %788 = vmatprep.subr.mxu0 0.0
    %789 = vmatpush2.msra.mxu0 0.0
    %790 = vmatprep.subr.mxu0 0.0
    %791 = vmatpush2.msra.mxu0 0.0
    %792 = vmatprep.subr.mxu0 0.0
    %793 = vmatpush2.msra.mxu0 0.0
    %794 = vmatprep.subr.mxu0 0.0
    %795 = vmatpush2.msra.mxu0 0.0
    %796 = vmatprep.mubr.f32.mxu0 0.0
    %797 = vmatmul.mubr.f32.gmra.mxu0 %v693
    %v798 = vpop.f32.mrf.mxu0
    %v799 = vadd.f32 %v730, %v798
    %v800 = vpop.f32.mrf.mxu0
    %801 = vmatprep.mubr.f32.mxu0 0.0
    %802 = vmatmul.mubr.f32.gmra.mxu0 %v694
    %v803 = vpop.f32.mrf.mxu0
    %v804 = vadd.f32 %v730, %v803
    %v805 = vpop.f32.mrf.mxu0
    %806 = vmatprep.mubr.f32.mxu0 0.0
    %807 = vmatmul.mubr.f32.gmra.mxu0 %v695
    %v808 = vpop.f32.mrf.mxu0
    %v809 = vadd.f32 %v730, %v808
    %v810 = vpop.f32.mrf.mxu0
    %811 = vmatprep.mubr.f32.mxu0 0.0
    %812 = vmatmul.mubr.f32.gmra.mxu0 %v696
    %v813 = vpop.f32.mrf.mxu0
    %v814 = vadd.f32 %v730, %v813
    %v815 = vpop.f32.mrf.mxu0
    %816 = vmatprep.mubr.f32.mxu0 0.0
    %817 = vmatmul.mubr.f32.gmra.mxu0 %v697
    %v818 = vpop.f32.mrf.mxu0
    %v819 = vadd.f32 %v730, %v818
    %v820 = vpop.f32.mrf.mxu0
    %821 = vmatprep.mubr.f32.mxu0 0.0
    %822 = vmatmul.mubr.f32.gmra.mxu0 %v698
    %v823 = vpop.f32.mrf.mxu0
    %v824 = vadd.f32 %v730, %v823
    %v825 = vpop.f32.mrf.mxu0
    %826 = vmatprep.mubr.f32.mxu0 0.0
    %827 = vmatmul.mubr.f32.gmra.mxu0 %v699
    %v828 = vpop.f32.mrf.mxu0
    %v829 = vadd.f32 %v730, %v828
    %v830 = vpop.f32.mrf.mxu0
    %831 = vmatprep.mubr.f32.mxu0 0.0
    %832 = vmatmul.mubr.f32.gmra.mxu0 %v700
    %v833 = vpop.f32.mrf.mxu0
    %v834 = vadd.f32 %v730, %v833
    %v835 = vpop.f32.mrf.mxu0
    %836 = vdwg.mxu0
    %v837 = vtanh.pop %v799
    %v838 = vtanh.pop %v804
    %v839 = vtanh.pop %v809
    %v840 = vtanh.pop %v814
    %v841 = vtanh.pop %v819
    %v842 = vtanh.pop %v824
    %v843 = vtanh.pop %v829
    %v844 = vtanh.pop %v834
    %845 = vst.msk [vmem:[%s8] sm:$0xff] %vm95, %v837
    %846 = vst.msk [vmem:[%s8 + $0x8] sm:$0xff] %vm95, %v838
    %847 = vst.msk [vmem:[%s8 + $0x10] sm:$0xff] %vm95, %v839
    %848 = vst.msk [vmem:[%s8 + $0x18] sm:$0xff] %vm95, %v840
    %849 = vst.msk [vmem:[%s8 + $0x20] sm:$0xff] %vm95, %v841
    %850 = vst.msk [vmem:[%s8 + $0x28] sm:$0xff] %vm95, %v842
    %851 = vst.msk [vmem:[%s8 + $0x30] sm:$0xff] %vm95, %v843
    %852 = vst.msk [vmem:[%s8 + $0x38] sm:$0xff] %vm95, %v844
    // Predicated region
    $region34: #{tpu_custom_call.1} parent=1 // pred_check
      _
    $region35: #{tpu_custom_call.1} parent=1 // pred_check_branch
      %854 = sbr.rel (0) target = $region37
    $region36: #{tpu_custom_call.1} parent=1 // pred_region
      %s856 = ssub.s32 1024, 1024
      %857 = vsyncadd [#allocation4], %s856
      %s858 = sshll.u32 [#allocation5], 4
      %s859 = int_to_ptr.vmem [resolvable:$true] %s858
      %864 = dma.vmem_to_hbm [thread:$0]  %s859, 1024, %s7, [#allocation4], 128, 128, 8
    $region37: #{tpu_custom_call.1} parent=1 // pred_fallthru
      _
    // Predicated region
    $region38: #{tpu_custom_call.1} parent=1 // pred_check
      _
    $region39: #{tpu_custom_call.1} parent=1 // pred_check_branch
      %866 = sbr.rel (0) target = $region41
    $region40: #{tpu_custom_call.1} parent=1 // pred_region
      _
    $region41: #{tpu_custom_call.1} parent=1 // pred_fallthru
      _
    // Predicated region
    $region42: #{tpu_custom_call.1} parent=1 // pred_check
      _
    $region43: #{tpu_custom_call.1} parent=1 // pred_check_branch
      %868 = sbr.rel (0) target = $region45
    $region44: #{tpu_custom_call.1} parent=1 // pred_region
      %869 = dma.done [#allocation4], 1024
    $region45: #{tpu_custom_call.1} parent=1 // pred_fallthru
      _
    // Predicated region
    $region46: #{tpu_custom_call.1} parent=1 // pred_check
      _
    $region47: #{tpu_custom_call.1} parent=1 // pred_check_branch
      %871 = sbr.rel (0) target = $region49
    $region48: #{tpu_custom_call.1} parent=1 // pred_region
      _
    $region49: #{tpu_custom_call.1} parent=1 // pred_fallthru
      _
    %872 = vsyncpa [#allocation3], 1
    %873 = vsyncpa [#allocation4], 1

</llo_original>
